<compile_context>
chip_gen: v6e
topology: v6e:2x2x1
jax: 0.10.0
libtpu: 0.0.40
codegen_flags: <defaults>
</compile_context>

<pallas_src>
import functools
import math

import jax
import jax.numpy as jnp
from jax.experimental import pallas as pl
from jax.experimental.pallas import tpu as pltpu


def _xi_loglik_kernel(mu_ref, sigma_ref, eps_ref, xi_ref, ll_ref, *, norm_const):
    # Block shapes:
    #   mu_ref / sigma_ref / eps_ref / xi_ref : (TB, TS*D)   lane-dense
    #   ll_ref                                : (TB, 1)
    mu = mu_ref[...]
    sigma = sigma_ref[...] + 1e-5
    eps = eps_ref[...]

    # Reparameterization trick.
    xi_ref[...] = mu + sigma * eps

    # Diagonal-covariance Gaussian log_prob of xi, summed over latent_dim and
    # TS (both folded into the lane axis).  z = (xi - mu)/sigma == eps.
    per_elem = -0.5 * (eps * eps) - jnp.log(sigma)          # (TB, TS*D), VPU + EUP
    ll_ref[...] = jnp.sum(per_elem, axis=-1, keepdims=True) - norm_const


def _pick_row_tile(rows, row_bytes, vmem_budget_bytes=24 << 20):
    """Largest row tile (multiple of 8) keeping ~8 live double-buffered tiles
    (3 inputs + 1 output) under the VMEM budget.  Prefers a tile that divides
    `rows` exactly; otherwise returns a budget-sized tile (ragged last block
    is handled by Pallas read-padding / masked writeback)."""
    per_tile_budget = max(row_bytes, vmem_budget_bytes // 8)
    max_rows = max(8, (per_tile_budget // row_bytes) // 8 * 8)
    target = min(1024, max_rows)
    if rows <= target:
        return rows                       # single tile == full extent (always legal)
    for tb in range(target, 7, -8):       # multiples of 8, descending
        if rows % tb == 0:
            return tb
    return target                         # ragged grid via cdiv (still correct)


def calc_xi_and_loglikelihood(mu, sigma, eps):
    """mu, sigma, eps: (BS, num_clusters, TS, latent_dim) float32.

    Returns dict with:
      xi            : (BS, num_clusters, TS, latent_dim)
      LogLikelihood : (BS, num_clusters)
    """
    bs, nc, ts, ld = mu.shape
    rows, cols = bs * nc, ts * ld

    # Trailing-dim flatten: pure layout plumbing, no data movement semantics.
    mu2 = mu.reshape(rows, cols)
    sigma2 = sigma.reshape(rows, cols)
    eps2 = eps.reshape(rows, cols)

    tb = _pick_row_tile(rows, cols * 4)
    grid = (pl.cdiv(rows, tb),)

    data_spec = pl.BlockSpec((tb, cols), lambda i: (i, 0))
    ll_spec = pl.BlockSpec((tb, 1), lambda i: (i, 0))

    kernel = functools.partial(
        _xi_loglik_kernel,
        norm_const=ts * 0.5 * ld * math.log(2.0 * math.pi),
    )

    xi2, ll2 = pl.pallas_call(
        kernel,
        out_shape=(
            jax.ShapeDtypeStruct((rows, cols), mu.dtype),
            jax.ShapeDtypeStruct((rows, 1), jnp.float32),
        ),
        grid_spec=pl.GridSpec(
            grid=grid,
            in_specs=[data_spec, data_spec, data_spec],
            out_specs=(data_spec, ll_spec),
        ),
        compiler_params=pltpu.CompilerParams(
            dimension_semantics=("parallel",),
            vmem_limit_bytes=48 << 20,
        ),
    )(mu2, sigma2, eps2)

    return {
        "xi": xi2.reshape(bs, nc, ts, ld),
        "LogLikelihood": ll2.reshape(bs, nc),
    }


def _reference(mu, sigma_in, eps):
    sigma = sigma_in + 1e-5
    xi = mu + sigma * eps
    d = mu.shape[-1]
    z = (xi - mu) / sigma
    lp = (-0.5 * jnp.sum(z * z, axis=-1)
          - jnp.sum(jnp.log(sigma), axis=-1)
          - 0.5 * d * math.log(2.0 * math.pi))
    return xi, jnp.sum(lp, axis=2)


if __name__ == "__main__":
    # Small shapes consistent with the module: BS=2, num_clusters=4, TS=8, latent_dim=32.
    key = jax.random.PRNGKey(0)
    k_mu, k_sigma, k_eps = jax.random.split(key, 3)

    BS, NC, TS, LD = 2, 4, 8, 32
    mu = jax.random.normal(k_mu, (BS, NC, TS, LD), dtype=jnp.float32)
    sigma = jax.nn.softplus(
        jax.random.normal(k_sigma, (BS, NC, TS, LD), dtype=jnp.float32)
    )  # positive std-dev, as expected by the module
    eps = jax.random.normal(k_eps, (BS, NC, TS, LD), dtype=jnp.float32)

    out = calc_xi_and_loglikelihood(mu, sigma, eps)
    jax.block_until_ready(out)

    xi_ref, ll_ref = _reference(mu, sigma, eps)
    assert out["xi"].shape == (BS, NC, TS, LD)
    assert out["LogLikelihood"].shape == (BS, NC)
    assert jnp.allclose(out["xi"], xi_ref, atol=1e-5, rtol=1e-5)
    assert jnp.allclose(out["LogLikelihood"], ll_ref, atol=1e-3, rtol=1e-4)

    print("KERNEL_OK")
</pallas_src>

<mosaic_0001>
module attributes {stable_mosaic.version = 11 : i64} {
  func.func @_xi_loglik_kernel(%arg0: i32, %arg1: memref<8x256xf32, #tpu.memory_space<vmem>>, %arg2: memref<8x256xf32, #tpu.memory_space<vmem>>, %arg3: memref<8x256xf32, #tpu.memory_space<vmem>>, %arg4: memref<8x256xf32, #tpu.memory_space<vmem>>, %arg5: memref<8x1xf32, #tpu.memory_space<vmem>>) attributes {dimension_semantics = [#tpu.dimension_semantics<parallel>], iteration_bounds = array<i64: 1>, scalar_prefetch = 0 : i64, scratch_operands = 0 : i64, tpu.core_type = #tpu.core_type<tc>, window_params = [{transform_indices = @transform_0, window_bounds = array<i64: 8, 256>}, {transform_indices = @transform_1, window_bounds = array<i64: 8, 256>}, {transform_indices = @transform_2, window_bounds = array<i64: 8, 256>}, {transform_indices = @transform_3, window_bounds = array<i64: 8, 256>}, {transform_indices = @transform_4, window_bounds = array<i64: 8, 1>}]} {
    %c0 = arith.constant 0 : index
    %c0_0 = arith.constant 0 : index
    %0 = vector.load %arg1[%c0, %c0_0] : memref<8x256xf32, #tpu.memory_space<vmem>>, vector<8x256xf32>
    %c0_1 = arith.constant 0 : index
    %c0_2 = arith.constant 0 : index
    %1 = vector.load %arg2[%c0_1, %c0_2] : memref<8x256xf32, #tpu.memory_space<vmem>>, vector<8x256xf32>
    %cst = arith.constant 9.99999974E-6 : f32
    %2 = vector.broadcast %cst : f32 to vector<8x256xf32>
    %3 = arith.addf %1, %2 : vector<8x256xf32>
    %c0_3 = arith.constant 0 : index
    %c0_4 = arith.constant 0 : index
    %4 = vector.load %arg3[%c0_3, %c0_4] : memref<8x256xf32, #tpu.memory_space<vmem>>, vector<8x256xf32>
    %5 = arith.mulf %3, %4 : vector<8x256xf32>
    %6 = arith.addf %0, %5 : vector<8x256xf32>
    %c0_5 = arith.constant 0 : index
    %c0_6 = arith.constant 0 : index
    %7 = vector.load %arg4[%c0_5, %c0_6] : memref<8x256xf32, #tpu.memory_space<vmem>>, vector<8x256xf32>
    tpu.vector_store %arg4[%c0_5, %c0_6], %6 {strides = array<i32>} : memref<8x256xf32, #tpu.memory_space<vmem>>, vector<8x256xf32>,
    %8 = arith.mulf %4, %4 : vector<8x256xf32>
    %cst_7 = arith.constant -5.000000e-01 : f32
    %9 = vector.broadcast %cst_7 : f32 to vector<8x256xf32>
    %10 = arith.mulf %9, %8 : vector<8x256xf32>
    %11 = math.log %3 : vector<8x256xf32>
    %12 = arith.subf %10, %11 : vector<8x256xf32>
    %cst_8 = arith.constant dense<0.000000e+00> : vector<8xf32>
    %13 = vector.multi_reduction <add>, %12, %cst_8 [1] : vector<8x256xf32> to vector<8xf32>
    %14 = vector.shape_cast %13 : vector<8xf32> to vector<8x1xf32>
    %cst_9 = arith.constant 235.24826 : f32
    %15 = vector.broadcast %cst_9 : f32 to vector<8x1xf32>
    %16 = arith.subf %14, %15 : vector<8x1xf32>
    %c0_10 = arith.constant 0 : index
    %c0_11 = arith.constant 0 : index
    %17 = vector.load %arg5[%c0_10, %c0_11] : memref<8x1xf32, #tpu.memory_space<vmem>>, vector<8x1xf32>
    tpu.vector_store %arg5[%c0_10, %c0_11], %16 {strides = array<i32>} : memref<8x1xf32, #tpu.memory_space<vmem>>, vector<8x1xf32>,
    return
  }
  func.func @transform_0(%arg0: i32) -> (i32, i32) {
    %c0_i32 = arith.constant 0 : i32
    %c0_i32_0 = arith.constant 0 : i32
    return %arg0, %c0_i32 : i32, i32
  }
  func.func @transform_1(%arg0: i32) -> (i32, i32) {
    %c0_i32 = arith.constant 0 : i32
    %c0_i32_0 = arith.constant 0 : i32
    return %arg0, %c0_i32 : i32, i32
  }
  func.func @transform_2(%arg0: i32) -> (i32, i32) {
    %c0_i32 = arith.constant 0 : i32
    %c0_i32_0 = arith.constant 0 : i32
    return %arg0, %c0_i32 : i32, i32
  }
  func.func @transform_3(%arg0: i32) -> (i32, i32) {
    %c0_i32 = arith.constant 0 : i32
    %c0_i32_0 = arith.constant 0 : i32
    return %arg0, %c0_i32 : i32, i32
  }
  func.func @transform_4(%arg0: i32) -> (i32, i32) {
    %c0_i32 = arith.constant 0 : i32
    %c0_i32_0 = arith.constant 0 : i32
    return %arg0, %c0_i32 : i32, i32
  }
}

</mosaic_0001>

<llo_original>
// kernel: tpu_custom_call.1
$region0: #{tpu_custom_call.1}
  #allocation0 [shape = 'u32[]', space=smem, size = 0x4, offset = 0x4, fixed_abs, tag = 'smem constant byte address 0x4 - core index']
  #allocation1 [shape = 'u32[144,128]{1,0:T(1,128)}', space=vmem, size = 0x12000, scoped, tag = 'internal scratch']
  %s0 = inlined_call_operand.hbm [shape: f32[8,256], index: 0, kind: input, shape index: {}]
  %s1 = inlined_call_operand.hbm [shape: f32[8,256], index: 1, kind: input, shape index: {}]
  %s2 = inlined_call_operand.hbm [shape: f32[8,256], index: 2, kind: input, shape index: {}]
  %s3 = inlined_call_operand.hbm [shape: f32[8,256], index: 3, kind: output, shape index: {0}]
  %s4 = inlined_call_operand.vmem [shape: f32[8,1], index: 4, kind: output, shape index: {1}]
  %5 = xla_tuple %s3, %s4
  %s6 = sld [smem:[#allocation0]]
  $region42: #{tpu_custom_call.1} parent=0
    _
  %s8 = ssub.s32 1, %s6
  %s9 = scalar_select 0, %s8, %s6
  $region1: #{tpu_custom_call.1} parent=0
    #allocation2 [shape = 'u8[8192]{0}', space=vmem, size = 0x2000, scoped, tag = 'input window, operand 0, single buffered']
    #allocation3 [shape = 's32[1]{0}', space=sflag, size = 0x4, scoped, tag = 'scoped memory for tpu_custom_call.1']
    #allocation4 [shape = 's32[1]{0}', space=sflag, size = 0x4, scoped, tag = 'scoped memory for tpu_custom_call.1']
    #allocation5 [shape = 'u8[8192]{0}', space=vmem, size = 0x2000, scoped, tag = 'input window, operand 1, single buffered']
    #allocation6 [shape = 's32[1]{0}', space=sflag, size = 0x4, scoped, tag = 'scoped memory for tpu_custom_call.1']
    #allocation7 [shape = 'u8[8192]{0}', space=vmem, size = 0x2000, scoped, tag = 'input window, operand 2, single buffered']
    #allocation8 [shape = 'u8[8192]{0}', space=vmem, size = 0x2000, scoped, tag = 'output window, operand 0, single buffered']
    %10 = vsyncpa [#allocation3], 0
    %11 = vsyncpa [#allocation6], 0
    %12 = vsyncpa [#allocation4], 0
    // Predicated region
    $region2: #{tpu_custom_call.1} parent=1 // pred_check
      _
    $region3: #{tpu_custom_call.1} parent=1 // pred_check_branch
      %14 = sbr.rel (0) target = $region5
    $region4: #{tpu_custom_call.1} parent=1 // pred_region
      %s16 = ssub.s32 256, 256
      %17 = vsyncadd [#allocation3], %s16
      %s19 = sshll.u32 [#allocation2], 4
      %s20 = int_to_ptr.vmem [resolvable:$true] %s19
      %22 = dma.hbm_to_vmem [thread:$0]  %s0, 256, %s20, [#allocation3]
    $region5: #{tpu_custom_call.1} parent=1 // pred_fallthru
      _
    // Predicated region
    $region6: #{tpu_custom_call.1} parent=1 // pred_check
      _
    $region7: #{tpu_custom_call.1} parent=1 // pred_check_branch
      %24 = sbr.rel (0) target = $region9
    $region8: #{tpu_custom_call.1} parent=1 // pred_region
      %s26 = ssub.s32 256, 256
      %27 = vsyncadd [#allocation6], %s26
      %s29 = sshll.u32 [#allocation5], 4
      %s30 = int_to_ptr.vmem [resolvable:$true] %s29
      %32 = dma.hbm_to_vmem [thread:$0]  %s1, 256, %s30, [#allocation6]
    $region9: #{tpu_custom_call.1} parent=1 // pred_fallthru
      _
    // Predicated region
    $region10: #{tpu_custom_call.1} parent=1 // pred_check
      _
    $region11: #{tpu_custom_call.1} parent=1 // pred_check_branch
      %34 = sbr.rel (0) target = $region13
    $region12: #{tpu_custom_call.1} parent=1 // pred_region
      %s36 = ssub.s32 256, 256
      %37 = vsyncadd [#allocation6], %s36
      %s39 = sshll.u32 [#allocation7], 4
      %s40 = int_to_ptr.vmem [resolvable:$true] %s39
      %42 = dma.hbm_to_vmem [thread:$0]  %s2, 256, %s40, [#allocation6]
    $region13: #{tpu_custom_call.1} parent=1 // pred_fallthru
      _
    // Predicated region
    $region14: #{tpu_custom_call.1} parent=1 // pred_check
      _
    $region15: #{tpu_custom_call.1} parent=1 // pred_check_branch
      %44 = sbr.rel (0) target = $region17
    $region16: #{tpu_custom_call.1} parent=1 // pred_region
      %45 = dma.done [#allocation3], 256
    $region17: #{tpu_custom_call.1} parent=1 // pred_fallthru
      _
    // Predicated region
    $region18: #{tpu_custom_call.1} parent=1 // pred_check
      _
    $region19: #{tpu_custom_call.1} parent=1 // pred_check_branch
      %47 = sbr.rel (0) target = $region21
    $region20: #{tpu_custom_call.1} parent=1 // pred_region
      %48 = dma.done [#allocation6], 256
    $region21: #{tpu_custom_call.1} parent=1 // pred_fallthru
      _
    // Predicated region
    $region22: #{tpu_custom_call.1} parent=1 // pred_check
      _
    $region23: #{tpu_custom_call.1} parent=1 // pred_check_branch
      %50 = sbr.rel (0) target = $region25
    $region24: #{tpu_custom_call.1} parent=1 // pred_region
      %51 = dma.done [#allocation6], 256
    $region25: #{tpu_custom_call.1} parent=1 // pred_fallthru
      _
    %v52 = vld [vmem:[#allocation2] sm:$0xff]
    %v53 = vld [vmem:[#allocation2 + $0x8] sm:$0xff]
    %v54 = vld [vmem:[#allocation5] sm:$0xff]
    %v55 = vld [vmem:[#allocation5 + $0x8] sm:$0xff]
    %v56 = vadd.f32 %v54, 1e-05
    %v57 = vadd.f32 %v55, 1e-05
    %v58 = vld [vmem:[#allocation7] sm:$0xff]
    %v59 = vld [vmem:[#allocation7 + $0x8] sm:$0xff]
    %v60 = vmul.f32 %v56, %v58
    %v61 = vmul.f32 %v57, %v59
    %v62 = vadd.f32 %v52, %v60
    %v63 = vadd.f32 %v53, %v61
    %64 = vst [vmem:[#allocation8] sm:$0xff] %v62
    %65 = vst [vmem:[#allocation8 + $0x8] sm:$0xff] %v63
    %v66 = vmul.f32 %v58, %v58
    %v67 = vmul.f32 %v59, %v59
    %v68 = vmul.f32 %v66, -0.5
    %v69 = vmul.f32 %v67, -0.5
    %v70 = vlog2.pop %v56
    %v71 = vmul.f32 %v70, 0.6931472
    %v72 = vlog2.pop %v57
    %v73 = vmul.f32 %v72, 0.6931472
    %v74 = vsub.f32 %v68, %v71
    %v75 = vsub.f32 %v69, %v73
    %v76 = vadd.f32 %v74, %v75
    %77 = vadd.xlane.f32.xlu0 %v76
    %v78 = vpop.xlane.xlu0 %77
    %v79 = vsub.f32 %v78, 235.24826
    %vm80 = vcmask 7168
    %81 = vst.msk [vmem:[%s4] sm:$0xff] %vm80, %v79
    // Predicated region
    $region26: #{tpu_custom_call.1} parent=1 // pred_check
      _
    $region27: #{tpu_custom_call.1} parent=1 // pred_check_branch
      %83 = sbr.rel (0) target = $region29
    $region28: #{tpu_custom_call.1} parent=1 // pred_region
      %s85 = ssub.s32 256, 256
      %86 = vsyncadd [#allocation4], %s85
      %s88 = sshll.u32 [#allocation8], 4
      %s89 = int_to_ptr.vmem [resolvable:$true] %s88
      %91 = dma.vmem_to_hbm [thread:$0]  %s89, 256, %s3, [#allocation4]
    $region29: #{tpu_custom_call.1} parent=1 // pred_fallthru
      _
    // Predicated region
    $region30: #{tpu_custom_call.1} parent=1 // pred_check
      _
    $region31: #{tpu_custom_call.1} parent=1 // pred_check_branch
      %93 = sbr.rel (0) target = $region33
    $region32: #{tpu_custom_call.1} parent=1 // pred_region
      _
    $region33: #{tpu_custom_call.1} parent=1 // pred_fallthru
      _
    // Predicated region
    $region34: #{tpu_custom_call.1} parent=1 // pred_check
      _
    $region35: #{tpu_custom_call.1} parent=1 // pred_check_branch
      %95 = sbr.rel (0) target = $region37
    $region36: #{tpu_custom_call.1} parent=1 // pred_region
      %96 = dma.done [#allocation4], 256
    $region37: #{tpu_custom_call.1} parent=1 // pred_fallthru
      _
    // Predicated region
    $region38: #{tpu_custom_call.1} parent=1 // pred_check
      _
    $region39: #{tpu_custom_call.1} parent=1 // pred_check_branch
      %98 = sbr.rel (0) target = $region41
    $region40: #{tpu_custom_call.1} parent=1 // pred_region
      _
    $region41: #{tpu_custom_call.1} parent=1 // pred_fallthru
      _
    %99 = vsyncpa [#allocation3], 1
    %100 = vsyncpa [#allocation6], 1
    %101 = vsyncpa [#allocation4], 1

</llo_original>
